<compile_context>
chip_gen: v7x
topology: tpu7x:2x2x1
jax: 0.10.0
libtpu: 0.0.40
codegen_flags: <defaults>
</compile_context>

<pallas_src>
from functools import partial

import jax
import jax.numpy as jnp
from jax.experimental import pallas as pl
from jax.experimental.pallas import tpu as pltpu

# ---- configuration (small synthetic shapes consistent with the module) ----
NUM_META_PATHS = 3      # num_meta_paths
N_NODES        = 16     # number of graph nodes
IN_SIZE        = 8      # in_ent_size
HID_SIZE       = 8      # hid_size (per-head output size of GAT)
NUM_HEADS      = 2      # num_heads
SEM_HIDDEN     = 128    # SemanticAttention default hidden_size
ALPHA          = 0.2    # LeakyReLU negative slope
FEAT           = HID_SIZE * NUM_HEADS   # semantic-attention in_size
# TODO(synk): dropout (train-mode stochastic masking) and .cuda()/Variable glue have no
#             role in a deterministic inference kernel and are omitted.


# ------------------------- fused Pallas kernel -----------------------------
def han_kernel(h_ref, w_ref, asrc_ref, adst_ref, adj_ref,
               sw1_ref, sb1_ref, sw2_ref,
               out_ref, z_ref, *, num_heads, hid, alpha):
    """One metapath per grid step; semantic attention fused at the last step.

    h_ref    : [N, Fin]            node features (same block every step)
    w_ref    : [Fin, H*hid]        per-metapath GAT weights, heads concatenated on lanes
    asrc_ref : [H, hid]            source attention vectors
    adst_ref : [H, hid]            destination attention vectors
    adj_ref  : [N, N]              dense adjacency of this metapath
    sw1/sb1  : [F, SEM_HIDDEN] / [1, SEM_HIDDEN]   semantic projection
    sw2_ref  : [1, SEM_HIDDEN]     second projection (row vector, no bias)
    out_ref  : [N, F]              final HAN-layer output (written at last step only)
    z_ref    : VMEM scratch [M, N, F] holding all metapath embeddings
    """
    m = pl.program_id(0)
    h = h_ref[...]                      # [N, Fin]
    w = w_ref[...]                      # [Fin, F]
    asrc = asrc_ref[...]                # [H, hid]
    adst = adst_ref[...]                # [H, hid]
    adj = adj_ref[...]                  # [N, N]
    n = h.shape[0]

    # One MXU matmul for ALL heads (heads live on the lane axis of the result).
    wh = jnp.dot(h, w, preferred_element_type=jnp.float32)          # [N, H*hid]

    head_outs = []
    for hd in range(num_heads):                                      # static, small
        wh_h = wh[:, hd * hid:(hd + 1) * hid]                        # [N, hid] lane slice
        e_src = jnp.sum(wh_h * asrc[hd][None, :], axis=-1, keepdims=True)   # [N, 1]
        e_dst = jnp.sum(wh_h * adst[hd][None, :], axis=-1, keepdims=True)   # [N, 1]
        e = e_src + e_dst.reshape(1, n)                              # [N, N]
        e = jnp.where(e > 0, e, alpha * e)                           # LeakyReLU(alpha)
        e = jnp.where(adj > 0, e, jnp.float32(-9e15))                # mask non-edges
        mmax = jnp.max(e, axis=1, keepdims=True)
        p = jnp.exp(e - mmax)
        inv = pl.reciprocal(jnp.sum(p, axis=1, keepdims=True), approx=True)  # EUP
        attn = p * inv                                               # softmax rows
        hp = jnp.dot(attn, wh_h, preferred_element_type=jnp.float32)  # [N, hid]
        # ELU with inf-safe unselected branch: exp(min(x, 0)) - 1
        head_outs.append(jnp.where(hp > 0, hp, jnp.exp(jnp.minimum(hp, 0.0)) - 1.0))

    # Lane-dense [N, H*hid] write directly into the semantic-attention layout.
    z_ref[m] = jnp.concatenate(head_outs, axis=-1)

    # -------- semantic attention, only on the last metapath step --------
    @pl.when(m == pl.num_programs(0) - 1)
    def _():
        z = z_ref[...]                                               # [M, N, F]
        mm, nn, ff = z.shape
        z2 = z.reshape(mm * nn, ff)                                  # [M*N, F]
        proj = jnp.tanh(
            jnp.dot(z2, sw1_ref[...], preferred_element_type=jnp.float32) + sb1_ref[...]
        )                                                            # [M*N, SEM_HIDDEN]
        # second projection (hidden -> 1): VPU multiply + lane reduce, no 1-col MXU op
        wl = jnp.sum(proj * sw2_ref[...], axis=-1, keepdims=True)    # [M*N, 1]
        wl = wl.reshape(mm, nn)                                      # [M, N]
        wmean = jnp.mean(wl, axis=1, keepdims=True)                  # [M, 1]  (= .mean(0))
        wmax = jnp.max(wmean, axis=0, keepdims=True)
        ew = jnp.exp(wmean - wmax)
        beta = ew * pl.reciprocal(jnp.sum(ew, axis=0, keepdims=True), approx=True)  # [M,1]
        out_ref[...] = jnp.sum(z * beta[:, :, None], axis=0)         # [N, F]


# --------------------------- wrapper ---------------------------------------
def han_layer_forward(h, adjs, gat_w, gat_asrc, gat_adst, sem_w1, sem_b1, sem_w2):
    M, H, Fin, hid = gat_w.shape
    N = h.shape[0]
    F = H * hid

    # Heads concatenated on the output-feature (lane) axis -> one matmul per metapath.
    gat_w_cat = jnp.transpose(gat_w, (0, 2, 1, 3)).reshape(M, Fin, F)   # [M, Fin, H*hid]
    sem_w2_row = sem_w2.reshape(1, SEM_HIDDEN)                           # [1, SEM_HIDDEN]

    out = pl.pallas_call(
        partial(han_kernel, num_heads=H, hid=hid, alpha=ALPHA),
        out_shape=jax.ShapeDtypeStruct((N, F), jnp.float32),
        grid=(M,),
        in_specs=[
            pl.BlockSpec((N, Fin), lambda m: (0, 0)),
            pl.BlockSpec((pl.Squeezed(), Fin, F), lambda m: (m, 0, 0)),
            pl.BlockSpec((pl.Squeezed(), H, hid), lambda m: (m, 0, 0)),
            pl.BlockSpec((pl.Squeezed(), H, hid), lambda m: (m, 0, 0)),
            pl.BlockSpec((pl.Squeezed(), N, N), lambda m: (m, 0, 0)),
            pl.BlockSpec((F, SEM_HIDDEN), lambda m: (0, 0)),
            pl.BlockSpec((1, SEM_HIDDEN), lambda m: (0, 0)),
            pl.BlockSpec((1, SEM_HIDDEN), lambda m: (0, 0)),
        ],
        out_specs=pl.BlockSpec((N, F), lambda m: (0, 0)),
        scratch_shapes=[pltpu.VMEM((M, N, F), jnp.float32)],
        compiler_params=pltpu.CompilerParams(
            # z accumulates across metapaths and the output is emitted at the last
            # step, so the metapath axis must remain sequential.
            dimension_semantics=("arbitrary",),
        ),
    )(h, gat_w_cat, gat_asrc, gat_adst, adjs, sem_w1, sem_b1, sem_w2_row)
    return out


def reference_forward(h, adjs, gat_w, gat_asrc, gat_adst, sem_w1, sem_b1, sem_w2):
    """Pure-JAX reference mirroring the PyTorch semantics."""
    embeds = []
    for m in range(NUM_META_PATHS):
        heads = []
        for hd in range(NUM_HEADS):
            wh = h @ gat_w[m, hd]
            e = (wh @ gat_asrc[m, hd])[:, None] + (wh @ gat_adst[m, hd])[None, :]
            e = jnp.where(e > 0, e, ALPHA * e)
            e = jnp.where(adjs[m] > 0, e, -9e15)
            attn = jax.nn.softmax(e, axis=1)
            hp = attn @ wh
            heads.append(jnp.where(hp > 0, hp, jnp.exp(jnp.minimum(hp, 0.0)) - 1.0))
        embeds.append(jnp.concatenate(heads, axis=-1))   # flatten(1)
    z = jnp.stack(embeds, axis=1)                         # [N, M, F]
    w = jnp.tanh(z @ sem_w1 + sem_b1) @ sem_w2            # [N, M, 1]
    wmean = w.mean(axis=0)                                # [M, 1]
    beta = jax.nn.softmax(wmean, axis=0)                  # softmax over metapaths
    return (beta[None] * z).sum(axis=1)                   # [N, F]


# ----------------------------- main ----------------------------------------
if __name__ == "__main__":
    key = jax.random.PRNGKey(0)
    k = jax.random.split(key, 8)

    # deterministic parameter init (synthetic)
    gat_w = 0.1 * jax.random.normal(k[0], (NUM_META_PATHS, NUM_HEADS, IN_SIZE, HID_SIZE), jnp.float32)
    gat_asrc = 0.1 * jax.random.normal(k[1], (NUM_META_PATHS, NUM_HEADS, HID_SIZE), jnp.float32)
    gat_adst = 0.1 * jax.random.normal(k[2], (NUM_META_PATHS, NUM_HEADS, HID_SIZE), jnp.float32)
    sem_w1 = 0.1 * jax.random.normal(k[3], (FEAT, SEM_HIDDEN), jnp.float32)
    sem_b1 = 0.1 * jax.random.normal(k[4], (1, SEM_HIDDEN), jnp.float32)
    sem_w2 = 0.1 * jax.random.normal(k[5], (SEM_HIDDEN, 1), jnp.float32)

    # inputs: node features + one dense adjacency per metapath (with self loops)
    h = jax.random.normal(k[6], (N_NODES, IN_SIZE), jnp.float32)
    adj_rand = jax.random.bernoulli(k[7], 0.3, (NUM_META_PATHS, N_NODES, N_NODES)).astype(jnp.float32)
    adjs = jnp.maximum(adj_rand, jnp.eye(N_NODES, dtype=jnp.float32)[None])

    out = han_layer_forward(h, adjs, gat_w, gat_asrc, gat_adst, sem_w1, sem_b1, sem_w2)
    out = jax.block_until_ready(out)

    ref = reference_forward(h, adjs, gat_w, gat_asrc, gat_adst, sem_w1, sem_b1, sem_w2)
    assert out.shape == (N_NODES, FEAT)
    # tolerance slightly relaxed vs. 1e-4 to accommodate approx (EUP) reciprocals
    assert jnp.allclose(out, ref, rtol=2e-3, atol=2e-3), "Pallas output mismatch vs reference"

    print("KERNEL_OK")
</pallas_src>

<mosaic_0001>
module attributes {stable_mosaic.version = 11 : i64} {
  func.func @han_kernel(%arg0: i32, %arg1: memref<16x8xf32, #tpu.memory_space<vmem>>, %arg2: memref<1x8x16xf32, #tpu.memory_space<vmem>>, %arg3: memref<1x2x8xf32, #tpu.memory_space<vmem>>, %arg4: memref<1x2x8xf32, #tpu.memory_space<vmem>>, %arg5: memref<1x16x16xf32, #tpu.memory_space<vmem>>, %arg6: memref<16x128xf32, #tpu.memory_space<vmem>>, %arg7: memref<1x128xf32, #tpu.memory_space<vmem>>, %arg8: memref<1x128xf32, #tpu.memory_space<vmem>>, %arg9: memref<16x16xf32, #tpu.memory_space<vmem>>, %arg10: memref<3x16x16xf32, #tpu.memory_space<vmem>>) attributes {dimension_semantics = [#tpu.dimension_semantics<arbitrary>], iteration_bounds = array<i64: 3>, scalar_prefetch = 0 : i64, scratch_operands = 1 : i64, tpu.core_type = #tpu.core_type<tc>, window_params = [{pipeline_mode = #tpu.pipeline_mode<synchronous>, transform_indices = @transform_0, window_bounds = array<i64: 16, 8>}, {transform_indices = @transform_1, window_bounds = array<i64: 1, 8, 16>}, {transform_indices = @transform_2, window_bounds = array<i64: 1, 2, 8>}, {transform_indices = @transform_3, window_bounds = array<i64: 1, 2, 8>}, {transform_indices = @transform_4, window_bounds = array<i64: 1, 16, 16>}, {pipeline_mode = #tpu.pipeline_mode<synchronous>, transform_indices = @transform_5, window_bounds = array<i64: 16, 128>}, {pipeline_mode = #tpu.pipeline_mode<synchronous>, transform_indices = @transform_6, window_bounds = array<i64: 1, 128>}, {pipeline_mode = #tpu.pipeline_mode<synchronous>, transform_indices = @transform_7, window_bounds = array<i64: 1, 128>}, {pipeline_mode = #tpu.pipeline_mode<synchronous>, transform_indices = @transform_8, window_bounds = array<i64: 16, 16>}]} {
    %c0 = arith.constant 0 : index
    %c0_0 = arith.constant 0 : index
    %0 = vector.load %arg1[%c0, %c0_0] : memref<16x8xf32, #tpu.memory_space<vmem>>, vector<16x8xf32>
    %c0_1 = arith.constant 0 : index
    %c0_2 = arith.constant 0 : index
    %c0_3 = arith.constant 0 : index
    %1 = vector.load %arg2[%c0_1, %c0_2, %c0_3] : memref<1x8x16xf32, #tpu.memory_space<vmem>>, vector<1x8x16xf32>
    %2 = vector.shape_cast %1 : vector<1x8x16xf32> to vector<8x16xf32>
    %c0_4 = arith.constant 0 : index
    %c0_5 = arith.constant 0 : index
    %c0_6 = arith.constant 0 : index
    %3 = vector.load %arg3[%c0_4, %c0_5, %c0_6] : memref<1x2x8xf32, #tpu.memory_space<vmem>>, vector<1x2x8xf32>
    %4 = vector.shape_cast %3 : vector<1x2x8xf32> to vector<2x8xf32>
    %c0_7 = arith.constant 0 : index
    %c0_8 = arith.constant 0 : index
    %c0_9 = arith.constant 0 : index
    %5 = vector.load %arg4[%c0_7, %c0_8, %c0_9] : memref<1x2x8xf32, #tpu.memory_space<vmem>>, vector<1x2x8xf32>
    %6 = vector.shape_cast %5 : vector<1x2x8xf32> to vector<2x8xf32>
    %c0_10 = arith.constant 0 : index
    %c0_11 = arith.constant 0 : index
    %c0_12 = arith.constant 0 : index
    %7 = vector.load %arg5[%c0_10, %c0_11, %c0_12] : memref<1x16x16xf32, #tpu.memory_space<vmem>>, vector<1x16x16xf32>
    %8 = vector.shape_cast %7 : vector<1x16x16xf32> to vector<16x16xf32>
    %cst = arith.constant dense<0.000000e+00> : vector<16x16xf32>
    %9 = tpu.matmul %0, %2, %cst {dimension_numbers = #tpu.dot_dimension_numbers<[1], [0], [0], [1], [0, 0, 1, 1], [], []>} : vector<16x8xf32>, vector<8x16xf32>, vector<16x16xf32> -> vector<16x16xf32>
    %10 = vector.extract_strided_slice %9 {offsets = [0, 0], sizes = [16, 8], strides = [1, 1]} : vector<16x16xf32> to vector<16x8xf32>
    %11 = vector.extract_strided_slice %4 {offsets = [0, 0], sizes = [1, 8], strides = [1, 1]} : vector<2x8xf32> to vector<1x8xf32>
    %12 = vector.shape_cast %11 : vector<1x8xf32> to vector<8xf32>
    %13 = vector.shape_cast %12 : vector<8xf32> to vector<1x8xf32>
    %14 = vector.broadcast %13 : vector<1x8xf32> to vector<16x8xf32>
    %15 = arith.mulf %10, %14 : vector<16x8xf32>
    %cst_13 = arith.constant dense<0.000000e+00> : vector<16xf32>
    %16 = vector.multi_reduction <add>, %15, %cst_13 [1] : vector<16x8xf32> to vector<16xf32>
    %17 = vector.shape_cast %16 : vector<16xf32> to vector<16x1xf32>
    %18 = vector.extract_strided_slice %6 {offsets = [0, 0], sizes = [1, 8], strides = [1, 1]} : vector<2x8xf32> to vector<1x8xf32>
    %19 = vector.shape_cast %18 : vector<1x8xf32> to vector<8xf32>
    %20 = vector.shape_cast %19 : vector<8xf32> to vector<1x8xf32>
    %21 = vector.broadcast %20 : vector<1x8xf32> to vector<16x8xf32>
    %22 = arith.mulf %10, %21 : vector<16x8xf32>
    %cst_14 = arith.constant dense<0.000000e+00> : vector<16xf32>
    %23 = vector.multi_reduction <add>, %22, %cst_14 [1] : vector<16x8xf32> to vector<16xf32>
    %24 = vector.shape_cast %23 : vector<16xf32> to vector<16x1xf32>
    %25 = vector.shape_cast %24 : vector<16x1xf32> to vector<1x16xf32>
    %26 = vector.broadcast %17 : vector<16x1xf32> to vector<16x16xf32>
    %27 = vector.broadcast %25 : vector<1x16xf32> to vector<16x16xf32>
    %28 = arith.addf %26, %27 : vector<16x16xf32>
    %cst_15 = arith.constant 0.000000e+00 : f32
    %29 = vector.broadcast %cst_15 : f32 to vector<16x16xf32>
    %30 = arith.cmpf ogt, %28, %29 : vector<16x16xf32>
    %cst_16 = arith.constant 2.000000e-01 : f32
    %31 = vector.broadcast %cst_16 : f32 to vector<16x16xf32>
    %32 = arith.mulf %31, %28 : vector<16x16xf32>
    %33 = arith.select %30, %28, %32 : vector<16x16xi1>, vector<16x16xf32>
    %cst_17 = arith.constant 0.000000e+00 : f32
    %34 = vector.broadcast %cst_17 : f32 to vector<16x16xf32>
    %35 = arith.cmpf ogt, %8, %34 : vector<16x16xf32>
    %cst_18 = arith.constant -9.000000e+15 : f32
    %36 = vector.broadcast %cst_18 : f32 to vector<16x16xf32>
    %37 = arith.select %35, %33, %36 : vector<16x16xi1>, vector<16x16xf32>
    %cst_19 = arith.constant dense<0xFF800000> : vector<16xf32>
    %38 = vector.multi_reduction <maximumf>, %37, %cst_19 [1] : vector<16x16xf32> to vector<16xf32>
    %39 = vector.shape_cast %38 : vector<16xf32> to vector<16x1xf32>
    %40 = vector.broadcast %39 : vector<16x1xf32> to vector<16x16xf32>
    %41 = arith.subf %37, %40 : vector<16x16xf32>
    %42 = math.exp %41 : vector<16x16xf32>
    %cst_20 = arith.constant dense<0.000000e+00> : vector<16xf32>
    %43 = vector.multi_reduction <add>, %42, %cst_20 [1] : vector<16x16xf32> to vector<16xf32>
    %44 = vector.shape_cast %43 : vector<16xf32> to vector<16x1xf32>
    %45 = tpu.reciprocal %44 {approx = true} : vector<16x1xf32> -> vector<16x1xf32>
    %46 = vector.broadcast %45 : vector<16x1xf32> to vector<16x16xf32>
    %47 = arith.mulf %42, %46 : vector<16x16xf32>
    %cst_21 = arith.constant dense<0.000000e+00> : vector<16x8xf32>
    %48 = tpu.matmul %47, %10, %cst_21 {dimension_numbers = #tpu.dot_dimension_numbers<[1], [0], [0], [1], [0, 0, 1, 1], [], []>} : vector<16x16xf32>, vector<16x8xf32>, vector<16x8xf32> -> vector<16x8xf32>
    %cst_22 = arith.constant 0.000000e+00 : f32
    %49 = vector.broadcast %cst_22 : f32 to vector<16x8xf32>
    %50 = arith.cmpf ogt, %48, %49 : vector<16x8xf32>
    %cst_23 = arith.constant 0.000000e+00 : f32
    %51 = vector.broadcast %cst_23 : f32 to vector<16x8xf32>
    %52 = arith.minimumf %48, %51 : vector<16x8xf32>
    %53 = math.exp %52 : vector<16x8xf32>
    %cst_24 = arith.constant 1.000000e+00 : f32
    %54 = vector.broadcast %cst_24 : f32 to vector<16x8xf32>
    %55 = arith.subf %53, %54 : vector<16x8xf32>
    %56 = arith.select %50, %48, %55 : vector<16x8xi1>, vector<16x8xf32>
    %57 = vector.extract_strided_slice %9 {offsets = [0, 8], sizes = [16, 8], strides = [1, 1]} : vector<16x16xf32> to vector<16x8xf32>
    %58 = vector.extract_strided_slice %4 {offsets = [1, 0], sizes = [1, 8], strides = [1, 1]} : vector<2x8xf32> to vector<1x8xf32>
    %59 = vector.shape_cast %58 : vector<1x8xf32> to vector<8xf32>
    %60 = vector.shape_cast %59 : vector<8xf32> to vector<1x8xf32>
    %61 = vector.broadcast %60 : vector<1x8xf32> to vector<16x8xf32>
    %62 = arith.mulf %57, %61 : vector<16x8xf32>
    %cst_25 = arith.constant dense<0.000000e+00> : vector<16xf32>
    %63 = vector.multi_reduction <add>, %62, %cst_25 [1] : vector<16x8xf32> to vector<16xf32>
    %64 = vector.shape_cast %63 : vector<16xf32> to vector<16x1xf32>
    %65 = vector.extract_strided_slice %6 {offsets = [1, 0], sizes = [1, 8], strides = [1, 1]} : vector<2x8xf32> to vector<1x8xf32>
    %66 = vector.shape_cast %65 : vector<1x8xf32> to vector<8xf32>
    %67 = vector.shape_cast %66 : vector<8xf32> to vector<1x8xf32>
    %68 = vector.broadcast %67 : vector<1x8xf32> to vector<16x8xf32>
    %69 = arith.mulf %57, %68 : vector<16x8xf32>
    %cst_26 = arith.constant dense<0.000000e+00> : vector<16xf32>
    %70 = vector.multi_reduction <add>, %69, %cst_26 [1] : vector<16x8xf32> to vector<16xf32>
    %71 = vector.shape_cast %70 : vector<16xf32> to vector<16x1xf32>
    %72 = vector.shape_cast %71 : vector<16x1xf32> to vector<1x16xf32>
    %73 = vector.broadcast %64 : vector<16x1xf32> to vector<16x16xf32>
    %74 = vector.broadcast %72 : vector<1x16xf32> to vector<16x16xf32>
    %75 = arith.addf %73, %74 : vector<16x16xf32>
    %cst_27 = arith.constant 0.000000e+00 : f32
    %76 = vector.broadcast %cst_27 : f32 to vector<16x16xf32>
    %77 = arith.cmpf ogt, %75, %76 : vector<16x16xf32>
    %cst_28 = arith.constant 2.000000e-01 : f32
    %78 = vector.broadcast %cst_28 : f32 to vector<16x16xf32>
    %79 = arith.mulf %78, %75 : vector<16x16xf32>
    %80 = arith.select %77, %75, %79 : vector<16x16xi1>, vector<16x16xf32>
    %cst_29 = arith.constant 0.000000e+00 : f32
    %81 = vector.broadcast %cst_29 : f32 to vector<16x16xf32>
    %82 = arith.cmpf ogt, %8, %81 : vector<16x16xf32>
    %cst_30 = arith.constant -9.000000e+15 : f32
    %83 = vector.broadcast %cst_30 : f32 to vector<16x16xf32>
    %84 = arith.select %82, %80, %83 : vector<16x16xi1>, vector<16x16xf32>
    %cst_31 = arith.constant dense<0xFF800000> : vector<16xf32>
    %85 = vector.multi_reduction <maximumf>, %84, %cst_31 [1] : vector<16x16xf32> to vector<16xf32>
    %86 = vector.shape_cast %85 : vector<16xf32> to vector<16x1xf32>
    %87 = vector.broadcast %86 : vector<16x1xf32> to vector<16x16xf32>
    %88 = arith.subf %84, %87 : vector<16x16xf32>
    %89 = math.exp %88 : vector<16x16xf32>
    %cst_32 = arith.constant dense<0.000000e+00> : vector<16xf32>
    %90 = vector.multi_reduction <add>, %89, %cst_32 [1] : vector<16x16xf32> to vector<16xf32>
    %91 = vector.shape_cast %90 : vector<16xf32> to vector<16x1xf32>
    %92 = tpu.reciprocal %91 {approx = true} : vector<16x1xf32> -> vector<16x1xf32>
    %93 = vector.broadcast %92 : vector<16x1xf32> to vector<16x16xf32>
    %94 = arith.mulf %89, %93 : vector<16x16xf32>
    %cst_33 = arith.constant dense<0.000000e+00> : vector<16x8xf32>
    %95 = tpu.matmul %94, %57, %cst_33 {dimension_numbers = #tpu.dot_dimension_numbers<[1], [0], [0], [1], [0, 0, 1, 1], [], []>} : vector<16x16xf32>, vector<16x8xf32>, vector<16x8xf32> -> vector<16x8xf32>
    %cst_34 = arith.constant 0.000000e+00 : f32
    %96 = vector.broadcast %cst_34 : f32 to vector<16x8xf32>
    %97 = arith.cmpf ogt, %95, %96 : vector<16x8xf32>
    %cst_35 = arith.constant 0.000000e+00 : f32
    %98 = vector.broadcast %cst_35 : f32 to vector<16x8xf32>
    %99 = arith.minimumf %95, %98 : vector<16x8xf32>
    %100 = math.exp %99 : vector<16x8xf32>
    %cst_36 = arith.constant 1.000000e+00 : f32
    %101 = vector.broadcast %cst_36 : f32 to vector<16x8xf32>
    %102 = arith.subf %100, %101 : vector<16x8xf32>
    %103 = arith.select %97, %95, %102 : vector<16x8xi1>, vector<16x8xf32>
    %104 = tpu.concatenate %56, %103 in 1 : vector<16x8xf32>, vector<16x8xf32> -> vector<16x16xf32>
    %105 = arith.index_cast %arg0 : i32 to index
    %c0_37 = arith.constant 0 : index
    %c0_38 = arith.constant 0 : index
    %106 = vector.load %arg10[%105, %c0_37, %c0_38] : memref<3x16x16xf32, #tpu.memory_space<vmem>>, vector<1x16x16xf32>
    %107 = vector.shape_cast %106 : vector<1x16x16xf32> to vector<16x16xf32>
    %108 = vector.shape_cast %104 : vector<16x16xf32> to vector<1x16x16xf32>
    tpu.vector_store %arg10[%105, %c0_37, %c0_38], %108 {strides = array<i32>} : memref<3x16x16xf32, #tpu.memory_space<vmem>>, vector<1x16x16xf32>,
    %c2_i32 = arith.constant 2 : i32
    %109 = arith.cmpi eq, %arg0, %c2_i32 : i32
    %110 = arith.extui %109 : i1 to i32
    %c0_i32 = arith.constant 0 : i32
    %111 = arith.cmpi ne, %110, %c0_i32 : i32
    scf.if %111 {
      %c0_39 = arith.constant 0 : index
      %c0_40 = arith.constant 0 : index
      %c0_41 = arith.constant 0 : index
      %112 = vector.load %arg10[%c0_39, %c0_40, %c0_41] : memref<3x16x16xf32, #tpu.memory_space<vmem>>, vector<3x16x16xf32>
      %113 = vector.shape_cast %112 : vector<3x16x16xf32> to vector<48x16xf32>
      %c0_42 = arith.constant 0 : index
      %c0_43 = arith.constant 0 : index
      %114 = vector.load %arg6[%c0_42, %c0_43] : memref<16x128xf32, #tpu.memory_space<vmem>>, vector<16x128xf32>
      %cst_44 = arith.constant dense<0.000000e+00> : vector<48x128xf32>
      %115 = tpu.matmul %113, %114, %cst_44 {dimension_numbers = #tpu.dot_dimension_numbers<[1], [0], [0], [1], [0, 0, 1, 1], [], []>} : vector<48x16xf32>, vector<16x128xf32>, vector<48x128xf32> -> vector<48x128xf32>
      %c0_45 = arith.constant 0 : index
      %c0_46 = arith.constant 0 : index
      %116 = vector.load %arg7[%c0_45, %c0_46] : memref<1x128xf32, #tpu.memory_space<vmem>>, vector<1x128xf32>
      %117 = vector.broadcast %116 : vector<1x128xf32> to vector<48x128xf32>
      %118 = arith.addf %115, %117 : vector<48x128xf32>
      %119 = math.tanh %118 : vector<48x128xf32>
      %c0_47 = arith.constant 0 : index
      %c0_48 = arith.constant 0 : index
      %120 = vector.load %arg8[%c0_47, %c0_48] : memref<1x128xf32, #tpu.memory_space<vmem>>, vector<1x128xf32>
      %121 = vector.broadcast %120 : vector<1x128xf32> to vector<48x128xf32>
      %122 = arith.mulf %119, %121 : vector<48x128xf32>
      %cst_49 = arith.constant dense<0.000000e+00> : vector<48xf32>
      %123 = vector.multi_reduction <add>, %122, %cst_49 [1] : vector<48x128xf32> to vector<48xf32>
      %124 = vector.shape_cast %123 : vector<48xf32> to vector<48x1xf32>
      %125 = vector.shape_cast %124 : vector<48x1xf32> to vector<3x16xf32>
      %cst_50 = arith.constant dense<0.000000e+00> : vector<3xf32>
      %126 = vector.multi_reduction <add>, %125, %cst_50 [1] : vector<3x16xf32> to vector<3xf32>
      %127 = vector.shape_cast %126 : vector<3xf32> to vector<3x1xf32>
      %cst_51 = arith.constant 1.600000e+01 : f32
      %128 = vector.broadcast %cst_51 : f32 to vector<3x1xf32>
      %129 = arith.divf %127, %128 : vector<3x1xf32>
      %cst_52 = arith.constant dense<0xFF800000> : vector<1xf32>
      %130 = vector.multi_reduction <maximumf>, %129, %cst_52 [0] : vector<3x1xf32> to vector<1xf32>
      %131 = vector.shape_cast %130 : vector<1xf32> to vector<1x1xf32>
      %132 = vector.broadcast %131 : vector<1x1xf32> to vector<3x1xf32>
      %133 = arith.subf %129, %132 : vector<3x1xf32>
      %134 = math.exp %133 : vector<3x1xf32>
      %cst_53 = arith.constant dense<0.000000e+00> : vector<1xf32>
      %135 = vector.multi_reduction <add>, %134, %cst_53 [0] : vector<3x1xf32> to vector<1xf32>
      %136 = vector.shape_cast %135 : vector<1xf32> to vector<1x1xf32>
      %137 = tpu.reciprocal %136 {approx = true} : vector<1x1xf32> -> vector<1x1xf32>
      %138 = vector.broadcast %137 : vector<1x1xf32> to vector<3x1xf32>
      %139 = arith.mulf %134, %138 : vector<3x1xf32>
      %140 = vector.shape_cast %139 : vector<3x1xf32> to vector<3x1x1xf32>
      %141 = vector.broadcast %140 : vector<3x1x1xf32> to vector<3x16x16xf32>
      %142 = arith.mulf %112, %141 : vector<3x16x16xf32>
      %cst_54 = arith.constant dense<0.000000e+00> : vector<16x16xf32>
      %143 = vector.multi_reduction <add>, %142, %cst_54 [0] : vector<3x16x16xf32> to vector<16x16xf32>
      %c0_55 = arith.constant 0 : index
      %c0_56 = arith.constant 0 : index
      %144 = vector.load %arg9[%c0_55, %c0_56] : memref<16x16xf32, #tpu.memory_space<vmem>>, vector<16x16xf32>
      tpu.vector_store %arg9[%c0_55, %c0_56], %143 {strides = array<i32>} : memref<16x16xf32, #tpu.memory_space<vmem>>, vector<16x16xf32>,
    } else {
    }
    return
  }
  func.func @transform_0(%arg0: i32) -> (i32, i32) {
    %c0_i32 = arith.constant 0 : i32
    %c0_i32_0 = arith.constant 0 : i32
    %c0_i32_1 = arith.constant 0 : i32
    return %c0_i32, %c0_i32_0 : i32, i32
  }
  func.func @transform_1(%arg0: i32) -> (i32, i32, i32) {
    %c0_i32 = arith.constant 0 : i32
    %c0_i32_0 = arith.constant 0 : i32
    %c0_i32_1 = arith.constant 0 : i32
    return %arg0, %c0_i32, %c0_i32_0 : i32, i32, i32
  }
  func.func @transform_2(%arg0: i32) -> (i32, i32, i32) {
    %c0_i32 = arith.constant 0 : i32
    %c0_i32_0 = arith.constant 0 : i32
    %c0_i32_1 = arith.constant 0 : i32
    return %arg0, %c0_i32, %c0_i32_0 : i32, i32, i32
  }
  func.func @transform_3(%arg0: i32) -> (i32, i32, i32) {
    %c0_i32 = arith.constant 0 : i32
    %c0_i32_0 = arith.constant 0 : i32
    %c0_i32_1 = arith.constant 0 : i32
    return %arg0, %c0_i32, %c0_i32_0 : i32, i32, i32
  }
  func.func @transform_4(%arg0: i32) -> (i32, i32, i32) {
    %c0_i32 = arith.constant 0 : i32
    %c0_i32_0 = arith.constant 0 : i32
    %c0_i32_1 = arith.constant 0 : i32
    return %arg0, %c0_i32, %c0_i32_0 : i32, i32, i32
  }
  func.func @transform_5(%arg0: i32) -> (i32, i32) {
    %c0_i32 = arith.constant 0 : i32
    %c0_i32_0 = arith.constant 0 : i32
    %c0_i32_1 = arith.constant 0 : i32
    return %c0_i32, %c0_i32_0 : i32, i32
  }
  func.func @transform_6(%arg0: i32) -> (i32, i32) {
    %c0_i32 = arith.constant 0 : i32
    %c0_i32_0 = arith.constant 0 : i32
    %c0_i32_1 = arith.constant 0 : i32
    return %c0_i32, %c0_i32_0 : i32, i32
  }
  func.func @transform_7(%arg0: i32) -> (i32, i32) {
    %c0_i32 = arith.constant 0 : i32
    %c0_i32_0 = arith.constant 0 : i32
    %c0_i32_1 = arith.constant 0 : i32
    return %c0_i32, %c0_i32_0 : i32, i32
  }
  func.func @transform_8(%arg0: i32) -> (i32, i32) {
    %c0_i32 = arith.constant 0 : i32
    %c0_i32_0 = arith.constant 0 : i32
    %c0_i32_1 = arith.constant 0 : i32
    return %c0_i32, %c0_i32_0 : i32, i32
  }
}

</mosaic_0001>

<llo_original>
// kernel: tpu_custom_call.1
$region0: #{tpu_custom_call.1}
  #allocation0 [shape = 'u32[]', space=smem, size = 0x4, offset = 0x4, fixed_abs, tag = 'smem constant byte address 0x4 - core index']
  #allocation1 [shape = 'u32[144,128]{1,0:T(1,128)}', space=vmem, size = 0x12000, scoped, tag = 'internal scratch']
  #allocation2 [shape = 'f32[3,16,16]{2,1,0:T(8,128)}', space=vmem, size = 0x6000, scoped, tag = 'scratch operand']
  %s0 = inlined_call_operand.vmem [shape: f32[16,8], index: 0, kind: input, shape index: {}]
  %s1 = inlined_call_operand.vmem [shape: f32[3,8,16], index: 1, kind: input, shape index: {}]
  %s2 = inlined_call_operand.hbm [shape: f32[3,2,8], index: 2, kind: input, shape index: {}]
  %s3 = inlined_call_operand.hbm [shape: f32[3,2,8], index: 3, kind: input, shape index: {}]
  %s4 = inlined_call_operand.hbm [shape: f32[3,16,16], index: 4, kind: input, shape index: {}]
  %s5 = inlined_call_operand.vmem [shape: f32[16,128], index: 5, kind: input, shape index: {}]
  %s6 = inlined_call_operand.vmem [shape: f32[1,128], index: 6, kind: input, shape index: {}]
  %s7 = inlined_call_operand.vmem [shape: f32[1,128], index: 7, kind: input, shape index: {}]
  %s8 = inlined_call_operand.hbm [shape: f32[16,16], index: 8, kind: output, shape index: {}]
  %s9 = sld [smem:[#allocation0]]
  $region81: #{tpu_custom_call.1} parent=0
    _
  %s11 = ssub.s32 1, %s9
  %s12 = scalar_select 0, %s11, %s9
  $region1: #{tpu_custom_call.1} parent=0
    #allocation3 [shape = 'u8[2048]{0}', space=vmem, size = 0x800, scoped, tag = 'input window, operand 2']
    #allocation4 [shape = 's32[2]{0}', space=sflag, size = 0x8, scoped, tag = 'scoped memory for tpu_custom_call.1']
    #allocation5 [shape = 's32[2]{0}', space=sflag, size = 0x8, scoped, tag = 'scoped memory for tpu_custom_call.1']
    #allocation6 [shape = 'u8[2048]{0}', space=vmem, size = 0x800, scoped, tag = 'input window, operand 3']
    #allocation7 [shape = 's32[2]{0}', space=sflag, size = 0x8, scoped, tag = 'scoped memory for tpu_custom_call.1']
    #allocation8 [shape = 'u8[16384]{0}', space=vmem, size = 0x4000, scoped, tag = 'input window, operand 4']
    #allocation9 [shape = 'u8[8192]{0}', space=vmem, size = 0x2000, scoped, tag = 'output window, operand 0, single buffered']
    %13 = vsyncpa [#allocation4], 0
    %s14 = scalar_lea.sflag [#allocation4], 1
    %15 = vsyncpa %s14, 0
    %16 = vsyncpa [#allocation7], 0
    %s17 = scalar_lea.sflag [#allocation7], 1
    %18 = vsyncpa %s17, 0
    %19 = vsyncpa [#allocation5], 0
    loop: start=0, step=1, limit=5
    $region2: #{tpu_custom_call.1} parent=1 // loop_pre_header
      _
    $region3: #{tpu_custom_call.1} parent=1 // loop_header
      %s21 = sphi 0, %s25
      %p22 = scmp.ge.s32.totalorder %s21, 5
      %s29 = sphi 0, %s29
      %s31 = sphi 0, %s29
      %s32 = sphi 0, %s31
      %s46 = sphi 0, %s32
      %s52 = sphi 0, %s54
      %s55 = sphi 0, %s52
      %s56 = sphi 0, %s55
      %s72 = sphi 0, %s56
      %s78 = sphi 0, %s80
      %s81 = sphi 0, %s78
      %s82 = sphi 0, %s81
      %s98 = sphi 0, %s82
      %s104 = sphi 0, %s106
      %s107 = sphi 0, %s104
      %s108 = sphi 0, %s107
      %s124 = sphi 0, %s108
      %s130 = sphi 0, %s132
      %s133 = sphi 0, %s130
      %s134 = sphi 0, %s133
      %s150 = sphi 0, %s134
      %s154 = sphi 0, %s154
      %s156 = sphi 0, %s154
      %s157 = sphi 0, %s156
      %s171 = sphi 0, %s157
      %s175 = sphi 0, %s175
      %s177 = sphi 0, %s175
      %s178 = sphi 0, %s177
      %s192 = sphi 0, %s178
      %s196 = sphi 0, %s196
      %s198 = sphi 0, %s196
      %s199 = sphi 0, %s198
      %s213 = sphi 0, %s199
      %s217 = sphi 0, %s217
      %s219 = sphi 0, %s217
      %s220 = sphi 0, %s219
      %s234 = sphi 0, %s220
    $region4: #{tpu_custom_call.1} parent=1 // loop_header_branch
      %24 = sbr.rel (%p22) target = $region8
    $region5: #{tpu_custom_call.1} parent=1 // loop_body
      %s26 = ssub.s32 %s21, 1
      %s27 = ssub.s32 %s21, 2
      %s28 = sadd.s32 %s21, 1
      %s30 = sadd.s32 %s29, 1
      %p33 = scmp.eq.s32.totalorder %s21, 2
      %p34 = scmp.ne.s32.totalorder %s29, %s31
      %p35 = scmp.eq.s32.totalorder %s21, 0
      %p36 = por %p34, %p35
      %p37 = scmp.ne.s32.totalorder %s29, %s31
      %p38 = scmp.eq.s32.totalorder %s26, 2
      %p39 = por %p37, %p38
      %p40 = scmp.ne.s32.totalorder %s31, %s32
      %p41 = scmp.eq.s32.totalorder %s26, 0
      %p42 = por %p40, %p41
      %p43 = scmp.ne.s32.totalorder %s31, %s32
      %p44 = scmp.eq.s32.totalorder %s27, 2
      %p45 = por %p43, %p44
      %p47 = scmp.ne.s32.totalorder %s32, %s46
      %p48 = scmp.eq.s32.totalorder %s27, 0
      %p49 = por %p47, %p48
      %s50 = ssub.s32 %s21, %s28
      %p51 = scmp.eq.s32.totalorder %s50, 0
      %s53 = sadd.s32 %s52, 1
      %s54 = scalar_select %p51, %s52, %s53
      %p57 = pneg %p51
      %p58 = scmp.eq.s32.totalorder %s21, 2
      %p59 = por %p57, %p58
      %p60 = scmp.ne.s32.totalorder %s52, %s55
      %p61 = scmp.eq.s32.totalorder %s21, 0
      %p62 = por %p60, %p61
      %p63 = scmp.ne.s32.totalorder %s52, %s55
      %p64 = scmp.eq.s32.totalorder %s26, 2
      %p65 = por %p63, %p64
      %p66 = scmp.ne.s32.totalorder %s55, %s56
      %p67 = scmp.eq.s32.totalorder %s26, 0
      %p68 = por %p66, %p67
      %p69 = scmp.ne.s32.totalorder %s55, %s56
      %p70 = scmp.eq.s32.totalorder %s27, 2
      %p71 = por %p69, %p70
      %p73 = scmp.ne.s32.totalorder %s56, %s72
      %p74 = scmp.eq.s32.totalorder %s27, 0
      %p75 = por %p73, %p74
      %s76 = ssub.s32 %s21, %s28
      %p77 = scmp.eq.s32.totalorder %s76, 0
      %s79 = sadd.s32 %s78, 1
      %s80 = scalar_select %p77, %s78, %s79
      %p83 = pneg %p77
      %p84 = scmp.eq.s32.totalorder %s21, 2
      %p85 = por %p83, %p84
      %p86 = scmp.ne.s32.totalorder %s78, %s81
      %p87 = scmp.eq.s32.totalorder %s21, 0
      %p88 = por %p86, %p87
      %p89 = scmp.ne.s32.totalorder %s78, %s81
      %p90 = scmp.eq.s32.totalorder %s26, 2
      %p91 = por %p89, %p90
      %p92 = scmp.ne.s32.totalorder %s81, %s82
      %p93 = scmp.eq.s32.totalorder %s26, 0
      %p94 = por %p92, %p93
      %p95 = scmp.ne.s32.totalorder %s81, %s82
      %p96 = scmp.eq.s32.totalorder %s27, 2
      %p97 = por %p95, %p96
      %p99 = scmp.ne.s32.totalorder %s82, %s98
      %p100 = scmp.eq.s32.totalorder %s27, 0
      %p101 = por %p99, %p100
      %s102 = ssub.s32 %s21, %s28
      %p103 = scmp.eq.s32.totalorder %s102, 0
      %s105 = sadd.s32 %s104, 1
      %s106 = scalar_select %p103, %s104, %s105
      %p109 = pneg %p103
      %p110 = scmp.eq.s32.totalorder %s21, 2
      %p111 = por %p109, %p110
      %p112 = scmp.ne.s32.totalorder %s104, %s107
      %p113 = scmp.eq.s32.totalorder %s21, 0
      %p114 = por %p112, %p113
      %p115 = scmp.ne.s32.totalorder %s104, %s107
      %p116 = scmp.eq.s32.totalorder %s26, 2
      %p117 = por %p115, %p116
      %p118 = scmp.ne.s32.totalorder %s107, %s108
      %p119 = scmp.eq.s32.totalorder %s26, 0
      %p120 = por %p118, %p119
      %p121 = scmp.ne.s32.totalorder %s107, %s108
      %p122 = scmp.eq.s32.totalorder %s27, 2
      %p123 = por %p121, %p122
      %p125 = scmp.ne.s32.totalorder %s108, %s124
      %p126 = scmp.eq.s32.totalorder %s27, 0
      %p127 = por %p125, %p126
      %s128 = ssub.s32 %s21, %s28
      %p129 = scmp.eq.s32.totalorder %s128, 0
      %s131 = sadd.s32 %s130, 1
      %s132 = scalar_select %p129, %s130, %s131
      %p135 = pneg %p129
      %p136 = scmp.eq.s32.totalorder %s21, 2
      %p137 = por %p135, %p136
      %p138 = scmp.ne.s32.totalorder %s130, %s133
      %p139 = scmp.eq.s32.totalorder %s21, 0
      %p140 = por %p138, %p139
      %p141 = scmp.ne.s32.totalorder %s130, %s133
      %p142 = scmp.eq.s32.totalorder %s26, 2
      %p143 = por %p141, %p142
      %p144 = scmp.ne.s32.totalorder %s133, %s134
      %p145 = scmp.eq.s32.totalorder %s26, 0
      %p146 = por %p144, %p145
      %p147 = scmp.ne.s32.totalorder %s133, %s134
      %p148 = scmp.eq.s32.totalorder %s27, 2
      %p149 = por %p147, %p148
      %p151 = scmp.ne.s32.totalorder %s134, %s150
      %p152 = scmp.eq.s32.totalorder %s27, 0
      %p153 = por %p151, %p152
      %s155 = sadd.s32 %s154, 1
      %p158 = scmp.eq.s32.totalorder %s21, 2
      %p159 = scmp.ne.s32.totalorder %s154, %s156
      %p160 = scmp.eq.s32.totalorder %s21, 0
      %p161 = por %p159, %p160
      %p162 = scmp.ne.s32.totalorder %s154, %s156
      %p163 = scmp.eq.s32.totalorder %s26, 2
      %p164 = por %p162, %p163
      %p165 = scmp.ne.s32.totalorder %s156, %s157
      %p166 = scmp.eq.s32.totalorder %s26, 0
      %p167 = por %p165, %p166
      %p168 = scmp.ne.s32.totalorder %s156, %s157
      %p169 = scmp.eq.s32.totalorder %s27, 2
      %p170 = por %p168, %p169
      %p172 = scmp.ne.s32.totalorder %s157, %s171
      %p173 = scmp.eq.s32.totalorder %s27, 0
      %p174 = por %p172, %p173
      %s176 = sadd.s32 %s175, 1
      %p179 = scmp.eq.s32.totalorder %s21, 2
      %p180 = scmp.ne.s32.totalorder %s175, %s177
      %p181 = scmp.eq.s32.totalorder %s21, 0
      %p182 = por %p180, %p181
      %p183 = scmp.ne.s32.totalorder %s175, %s177
      %p184 = scmp.eq.s32.totalorder %s26, 2
      %p185 = por %p183, %p184
      %p186 = scmp.ne.s32.totalorder %s177, %s178
      %p187 = scmp.eq.s32.totalorder %s26, 0
      %p188 = por %p186, %p187
      %p189 = scmp.ne.s32.totalorder %s177, %s178
      %p190 = scmp.eq.s32.totalorder %s27, 2
      %p191 = por %p189, %p190
      %p193 = scmp.ne.s32.totalorder %s178, %s192
      %p194 = scmp.eq.s32.totalorder %s27, 0
      %p195 = por %p193, %p194
      %s197 = sadd.s32 %s196, 1
      %p200 = scmp.eq.s32.totalorder %s21, 2
      %p201 = scmp.ne.s32.totalorder %s196, %s198
      %p202 = scmp.eq.s32.totalorder %s21, 0
      %p203 = por %p201, %p202
      %p204 = scmp.ne.s32.totalorder %s196, %s198
      %p205 = scmp.eq.s32.totalorder %s26, 2
      %p206 = por %p204, %p205
      %p207 = scmp.ne.s32.totalorder %s198, %s199
      %p208 = scmp.eq.s32.totalorder %s26, 0
      %p209 = por %p207, %p208
      %p210 = scmp.ne.s32.totalorder %s198, %s199
      %p211 = scmp.eq.s32.totalorder %s27, 2
      %p212 = por %p210, %p211
      %p214 = scmp.ne.s32.totalorder %s199, %s213
      %p215 = scmp.eq.s32.totalorder %s27, 0
      %p216 = por %p214, %p215
      %s218 = sadd.s32 %s217, 1
      %p221 = scmp.eq.s32.totalorder %s21, 2
      %p222 = scmp.ne.s32.totalorder %s217, %s219
      %p223 = scmp.eq.s32.totalorder %s21, 0
      %p224 = por %p222, %p223
      %p225 = scmp.ne.s32.totalorder %s217, %s219
      %p226 = scmp.eq.s32.totalorder %s26, 2
      %p227 = por %p225, %p226
      %p228 = scmp.ne.s32.totalorder %s219, %s220
      %p229 = scmp.eq.s32.totalorder %s26, 0
      %p230 = por %p228, %p229
      %p231 = scmp.ne.s32.totalorder %s219, %s220
      %p232 = scmp.eq.s32.totalorder %s27, 2
      %p233 = por %p231, %p232
      %p235 = scmp.ne.s32.totalorder %s220, %s234
      %p236 = scmp.eq.s32.totalorder %s27, 0
      %p237 = por %p235, %p236
      %p238 = scmp.le.s32.totalorder 1, %s21
      %p239 = scmp.lt.s32.totalorder %s21, 4
      %p240 = pnand %p238, %p239
      %p241 = pneg %p240
      // Predicated region
      $region9: #{tpu_custom_call.1} parent=5 // pred_check
        _
      $region10: #{tpu_custom_call.1} parent=5 // pred_check_branch
        %243 = sbr.rel (%p240) target = $region12
      $region11: #{tpu_custom_call.1} parent=5 // pred_region
        %s244 = ssub.s32 %s21, 1
        // Predicated region
        $region13: #{tpu_custom_call.1} parent=11 // pred_check
          %p245 = pneg %p42
        $region14: #{tpu_custom_call.1} parent=11 // pred_check_branch
          %247 = sbr.rel (%p245) target = $region16
        $region15: #{tpu_custom_call.1} parent=11 // pred_region
          _
        $region16: #{tpu_custom_call.1} parent=11 // pred_fallthru
          _
        // Predicated region
        $region17: #{tpu_custom_call.1} parent=11 // pred_check
          %p248 = pneg %p167
        $region18: #{tpu_custom_call.1} parent=11 // pred_check_branch
          %250 = sbr.rel (%p248) target = $region20
        $region19: #{tpu_custom_call.1} parent=11 // pred_region
          _
        $region20: #{tpu_custom_call.1} parent=11 // pred_fallthru
          _
        // Predicated region
        $region21: #{tpu_custom_call.1} parent=11 // pred_check
          %p251 = pneg %p188
        $region22: #{tpu_custom_call.1} parent=11 // pred_check_branch
          %253 = sbr.rel (%p251) target = $region24
        $region23: #{tpu_custom_call.1} parent=11 // pred_region
          _
        $region24: #{tpu_custom_call.1} parent=11 // pred_fallthru
          _
        // Predicated region
        $region25: #{tpu_custom_call.1} parent=11 // pred_check
          %p254 = pneg %p209
        $region26: #{tpu_custom_call.1} parent=11 // pred_check_branch
          %256 = sbr.rel (%p254) target = $region28
        $region27: #{tpu_custom_call.1} parent=11 // pred_region
          _
        $region28: #{tpu_custom_call.1} parent=11 // pred_fallthru
          _
      $region12: #{tpu_custom_call.1} parent=5 // pred_fallthru
        _
      %p257 = scmp.lt.s32.totalorder %s21, 3
      // Predicated region
      $region29: #{tpu_custom_call.1} parent=5 // pred_check
        %p258 = pneg %p257
      $region30: #{tpu_custom_call.1} parent=5 // pred_check_branch
        %260 = sbr.rel (%p258) target = $region32
      $region31: #{tpu_custom_call.1} parent=5 // pred_region
        // Predicated region
        $region33: #{tpu_custom_call.1} parent=31 // pred_check
          %p261 = pneg %p62
        $region34: #{tpu_custom_call.1} parent=31 // pred_check_branch
          %263 = sbr.rel (%p261) target = $region36
        $region35: #{tpu_custom_call.1} parent=31 // pred_region
          %p264 = scmp.lt.s32.totalorder %s21, 2
          %s265 = scalar_select %p264, %s21, 2
          %s266 = smul.addr %s265, 8
          %s267 = scalar_lea.vmem %s1, %s266
        $region36: #{tpu_custom_call.1} parent=31 // pred_fallthru
          _
        // Predicated region
        $region37: #{tpu_custom_call.1} parent=31 // pred_check
          %p268 = pneg %p88
        $region38: #{tpu_custom_call.1} parent=31 // pred_check_branch
          %270 = sbr.rel (%p268) target = $region40
        $region39: #{tpu_custom_call.1} parent=31 // pred_region
          %s271 = sand.u32 %s78, 1
          %s272 = scalar_lea.sflag [#allocation4], %s271
          %s273 = sand.u32 %s78, 1
          %s274 = smul.addr %s273, 2
          %s275 = scalar_lea.vmem [#allocation3], %s274
          %s277 = ssub.s32 32, 32
          %278 = vsyncadd %s272, %s277
          %s279 = smul.addr %s21, 32
          %s280 = scalar_lea.hbm %s2, %s279
          %s282 = sshll.u32 %s275, 4
          %s283 = int_to_ptr.vmem [resolvable:$true] %s282
          %285 = dma.hbm_to_vmem [thread:$0]  %s280, 32, %s283, %s272
        $region40: #{tpu_custom_call.1} parent=31 // pred_fallthru
          _
        // Predicated region
        $region41: #{tpu_custom_call.1} parent=31 // pred_check
          %p286 = pneg %p114
        $region42: #{tpu_custom_call.1} parent=31 // pred_check_branch
          %288 = sbr.rel (%p286) target = $region44
        $region43: #{tpu_custom_call.1} parent=31 // pred_region
          %s289 = sand.u32 %s21, 1
          %s290 = scalar_lea.sflag [#allocation7], %s289
          %s291 = sand.u32 %s104, 1
          %s292 = smul.addr %s291, 2
          %s293 = scalar_lea.vmem [#allocation6], %s292
          %s295 = ssub.s32 32, 32
          %296 = vsyncadd %s290, %s295
          %s297 = smul.addr %s21, 32
          %s298 = scalar_lea.hbm %s3, %s297
          %s300 = sshll.u32 %s293, 4
          %s301 = int_to_ptr.vmem [resolvable:$true] %s300
          %303 = dma.hbm_to_vmem [thread:$0]  %s298, 32, %s301, %s290
        $region44: #{tpu_custom_call.1} parent=31 // pred_fallthru
          _
        // Predicated region
        $region45: #{tpu_custom_call.1} parent=31 // pred_check
          %p304 = pneg %p140
        $region46: #{tpu_custom_call.1} parent=31 // pred_check_branch
          %306 = sbr.rel (%p304) target = $region48
        $region47: #{tpu_custom_call.1} parent=31 // pred_region
          %s307 = sand.u32 %s21, 1
          %s308 = scalar_lea.sflag [#allocation7], %s307
          %s309 = sand.u32 %s130, 1
          %s310 = smul.addr %s309, 16
          %s311 = scalar_lea.vmem [#allocation8], %s310
          %s313 = ssub.s32 256, 256
          %314 = vsyncadd %s308, %s313
          %s315 = smul.addr %s21, 2
          %s316 = smul.addr %s315, 128
          %s317 = scalar_lea.hbm %s4, %s316
          %s318 = sshll.u32 %s311, 4
          %s319 = int_to_ptr.vmem [resolvable:$true] %s318
          %324 = dma.hbm_to_vmem [thread:$0]  %s317, 256, %s319, %s308, 128, 128, 8
        $region48: #{tpu_custom_call.1} parent=31 // pred_fallthru
          _
      $region32: #{tpu_custom_call.1} parent=5 // pred_fallthru
        _
      %p325 = scmp.le.s32.totalorder 1, %s21
      %p326 = scmp.lt.s32.totalorder %s21, 4
      %p327 = pnand %p325, %p326
      %p328 = pneg %p327
      // Predicated region
      $region49: #{tpu_custom_call.1} parent=5 // pred_check
        _
      $region50: #{tpu_custom_call.1} parent=5 // pred_check_branch
        %330 = sbr.rel (%p327) target = $region52
      $region51: #{tpu_custom_call.1} parent=5 // pred_region
        %s331 = ssub.s32 %s21, 1
        %s332 = sand.u32 %s81, 1
        %s333 = scalar_lea.sflag [#allocation4], %s332
        %s334 = sand.u32 %s81, 1
        %s335 = smul.addr %s334, 2
        %s336 = scalar_lea.vmem [#allocation3], %s335
        // Predicated region
        $region53: #{tpu_custom_call.1} parent=51 // pred_check
          %p337 = pneg %p94
        $region54: #{tpu_custom_call.1} parent=51 // pred_check_branch
          %339 = sbr.rel (%p337) target = $region56
        $region55: #{tpu_custom_call.1} parent=51 // pred_region
          %340 = dma.done %s333, 32
        $region56: #{tpu_custom_call.1} parent=51 // pred_fallthru
          _
        %s341 = sand.u32 %s26, 1
        %s342 = scalar_lea.sflag [#allocation7], %s341
        %s343 = sand.u32 %s107, 1
        %s344 = smul.addr %s343, 2
        %s345 = scalar_lea.vmem [#allocation6], %s344
        // Predicated region
        $region57: #{tpu_custom_call.1} parent=51 // pred_check
          %p346 = pneg %p120
        $region58: #{tpu_custom_call.1} parent=51 // pred_check_branch
          %348 = sbr.rel (%p346) target = $region60
        $region59: #{tpu_custom_call.1} parent=51 // pred_region
          %349 = dma.done %s342, 32
        $region60: #{tpu_custom_call.1} parent=51 // pred_fallthru
          _
        %s350 = sand.u32 %s26, 1
        %s351 = scalar_lea.sflag [#allocation7], %s350
        %s352 = sand.u32 %s133, 1
        %s353 = smul.addr %s352, 16
        %s354 = scalar_lea.vmem [#allocation8], %s353
        // Predicated region
        $region61: #{tpu_custom_call.1} parent=51 // pred_check
          %p355 = pneg %p146
        $region62: #{tpu_custom_call.1} parent=51 // pred_check_branch
          %357 = sbr.rel (%p355) target = $region64
        $region63: #{tpu_custom_call.1} parent=51 // pred_region
          %358 = dma.done %s351, 256
        $region64: #{tpu_custom_call.1} parent=51 // pred_fallthru
          _
        %p359 = pneg %p42
        %p360 = pneg %p39
        %p361 = scmp.lt.s32.totalorder %s26, 2
        %s362 = scalar_select %p361, %s26, 2
        %s363 = smul.addr %s362, 8
        %s364 = scalar_lea.vmem %s1, %s363
        %p365 = pneg %p68
        %p366 = pneg %p65
        %s367 = sand.u32 %s81, 1
        %s368 = scalar_lea.sflag [#allocation4], %s367
        %s369 = sand.u32 %s81, 1
        %s370 = smul.addr %s369, 2
        %s371 = scalar_lea.vmem [#allocation3], %s370
        %p372 = pneg %p94
        %p373 = pneg %p91
        %s374 = sand.u32 %s26, 1
        %s375 = scalar_lea.sflag [#allocation7], %s374
        %s376 = sand.u32 %s107, 1
        %s377 = smul.addr %s376, 2
        %s378 = scalar_lea.vmem [#allocation6], %s377
        %p379 = pneg %p120
        %p380 = pneg %p117
        %s381 = sand.u32 %s26, 1
        %s382 = scalar_lea.sflag [#allocation7], %s381
        %s383 = sand.u32 %s133, 1
        %s384 = smul.addr %s383, 16
        %s385 = scalar_lea.vmem [#allocation8], %s384
        %p386 = pneg %p146
        %p387 = pneg %p143
        %p388 = pneg %p167
        %p389 = pneg %p164
        %p390 = pneg %p188
        %p391 = pneg %p185
        %p392 = pneg %p209
        %p393 = pneg %p206
        %p394 = pneg %p230
        %p395 = pneg %p227
        %p396 = scmp.lt.s32.totalorder %s26, 2
        %s397 = scalar_select %p396, %s26, 2
        %s398 = smul.addr %s397, 8
        %s399 = scalar_lea.vmem %s1, %s398
        %v400 = vld [vmem:[%s0] sm:$0xff]
        %v401 = vld [vmem:[%s0 + $0x8] sm:$0xff]
        %v402 = vld [vmem:[%s399] sm:$0xff]
        %v403 = vld [vmem:[%s336] sm:$0x3]
        %v404 = vld [vmem:[%s345] sm:$0x3]
        %v405 = vld [vmem:[%s354] sm:$0xff]
        %v406 = vld [vmem:[%s354 + $0x8] sm:$0xff]
        %vm407 = vcmask 64512
        %v409 = vsel %vm407, %v400, 0
        %v412 = vsel %vm407, %v401, 0
        %414 = vmatprep.subr.mxu0 0.0
        %415 = vmatpush1.msra.mxu0 %v402
        %416 = vmatprep.subr.mxu0 0.0
        %417 = vmatpush1.msra.mxu0 0.0
        %418 = vmatprep.subr.mxu0 0.0
        %419 = vmatpush1.msra.mxu0 0.0
        %420 = vmatprep.subr.mxu0 0.0
        %421 = vmatpush1.msra.mxu0 0.0
        %422 = vmatprep.subr.mxu0 0.0
        %423 = vmatpush1.msra.mxu0 0.0
        %424 = vmatprep.subr.mxu0 0.0
        %425 = vmatpush1.msra.mxu0 0.0
        %426 = vmatprep.subr.mxu0 0.0
        %427 = vmatpush1.msra.mxu0 0.0
        %428 = vmatprep.subr.mxu0 0.0
        %429 = vmatpush1.msra.mxu0 0.0
        %430 = vmatprep.subr.mxu0 0.0
        %431 = vmatpush1.msra.mxu0 0.0
        %432 = vmatprep.subr.mxu0 0.0
        %433 = vmatpush1.msra.mxu0 0.0
        %434 = vmatprep.subr.mxu0 0.0
        %435 = vmatpush1.msra.mxu0 0.0
        %436 = vmatprep.subr.mxu0 0.0
        %437 = vmatpush1.msra.mxu0 0.0
        %438 = vmatprep.subr.mxu0 0.0
        %439 = vmatpush1.msra.mxu0 0.0
        %440 = vmatprep.subr.mxu0 0.0
        %441 = vmatpush1.msra.mxu0 0.0
        %442 = vmatprep.subr.mxu0 0.0
        %443 = vmatpush1.msra.mxu0 0.0
        %444 = vmatprep.subr.mxu0 0.0
        %445 = vmatpush1.msra.mxu0 0.0
        %446 = vmatprep.subr.mxu0 0.0
        %447 = vmatpush1.msra.mxu0 0.0
        %448 = vmatprep.subr.mxu0 0.0
        %449 = vmatpush1.msra.mxu0 0.0
        %450 = vmatprep.subr.mxu0 0.0
        %451 = vmatpush1.msra.mxu0 0.0
        %452 = vmatprep.subr.mxu0 0.0
        %453 = vmatpush1.msra.mxu0 0.0
        %454 = vmatprep.subr.mxu0 0.0
        %455 = vmatpush1.msra.mxu0 0.0
        %456 = vmatprep.subr.mxu0 0.0
        %457 = vmatpush1.msra.mxu0 0.0
        %458 = vmatprep.subr.mxu0 0.0
        %459 = vmatpush1.msra.mxu0 0.0
        %460 = vmatprep.subr.mxu0 0.0
        %461 = vmatpush1.msra.mxu0 0.0
        %462 = vmatprep.subr.mxu0 0.0
        %463 = vmatpush1.msra.mxu0 0.0
        %464 = vmatprep.subr.mxu0 0.0
        %465 = vmatpush1.msra.mxu0 0.0
        %466 = vmatprep.subr.mxu0 0.0
        %467 = vmatpush1.msra.mxu0 0.0
        %468 = vmatprep.subr.mxu0 0.0
        %469 = vmatpush1.msra.mxu0 0.0
        %470 = vmatprep.subr.mxu0 0.0
        %471 = vmatpush1.msra.mxu0 0.0
        %472 = vmatprep.subr.mxu0 0.0
        %473 = vmatpush1.msra.mxu0 0.0
        %474 = vmatprep.subr.mxu0 0.0
        %475 = vmatpush1.msra.mxu0 0.0
        %476 = vmatprep.subr.mxu0 0.0
        %477 = vmatpush1.msra.mxu0 0.0
        %478 = vmatprep.mubr.f32.mxu0 0.0
        %479 = vmatmul.mubr.f32.gmra.mrb[0].mxu0 %v409
        %v480 = vpop.f32.mrb[0].mxu0
        %v481 = vadd.f32 0.0, %v480
        %v482 = vpop.f32.mrb[0].mxu0
        %483 = vmatprep.mubr.f32.mxu0 0.0
        %484 = vmatmul.mubr.f32.gmra.mrb[0].mxu0 %v412
        %v485 = vpop.f32.mrb[0].mxu0
        %v486 = vadd.f32 0.0, %v485
        %v487 = vpop.f32.mrb[0].mxu0
        %488 = vdwg.mxu0
        %v489 = vlaneseq
        %v490 = vshrl.u32 %v489, 7
        %v491 = vsub.s32 0, %v490
        %v492 = vrot.slane %v403, %v491
        %v493 = vmul.f32 %v481, %v492
        %v494 = vmul.f32 %v486, %v492
        %v495 = vsel %vm407, %v493, 0.0
        %496 = vadd.xlane.f32.xlu0 %v495
        %v497 = vpop.xlane.xlu0 %496
        %v498 = vsel %vm407, %v494, 0.0
        %499 = vadd.xlane.f32.xlu0 %v498
        %v500 = vpop.xlane.xlu0 %499
        %v501 = vlaneseq
        %v502 = vshrl.u32 %v501, 7
        %v503 = vsub.s32 0, %v502
        %v504 = vrot.slane %v404, %v503
        %v505 = vmul.f32 %v481, %v504
        %v506 = vmul.f32 %v486, %v504
        %v507 = vsel %vm407, %v505, 0.0
        %508 = vadd.xlane.f32.xlu0 %v507
        %v509 = vpop.xlane.xlu0 %508
        %v510 = vsel %vm407, %v506, 0.0
        %511 = vadd.xlane.f32.xlu0 %v510
        %v512 = vpop.xlane.xlu0 %511
        %v515 = vlaneseq
        %v516 = vand.u32 %v515, 127
        %v517 = vlaneseq
        %v518 = vshrl.u32 %v517, 7
        %v519 = vsub.s32 %v516, %v518
        %v520 = vrot.slane %v509, %v519
        %v521 = vadd.s32 %v516, 4294967288
        %v522 = vlaneseq
        %v523 = vshrl.u32 %v522, 7
        %v524 = vsub.s32 %v521, %v523
        %v525 = vrot.slane %v512, %v524
        %vm526 = vcmask 130112
        %v527 = vsel %vm526, %v525, %v520
        %vm528 = vcmask 1041409
        %vm529 = vcmask 1042434
        %v530 = vsel %vm529, %v527, %v527
        %vm531 = vcmask 1043459
        %v532 = vsel %vm531, %v527, %v530
        %vm533 = vcmask 1044484
        %v534 = vsel %vm533, %v527, %v532
        %vm535 = vcmask 1045509
        %v536 = vsel %vm535, %v527, %v534
        %vm537 = vcmask 1046534
        %v538 = vsel %vm537, %v527, %v536
        %vm539 = vcmask 1047559
        %v540 = vsel %vm539, %v527, %v538
        %v542 = vadd.f32 %v497, %v540
        %v543 = vadd.f32 %v500, %v540
        %vm544 = vcmp.gt.f32.partialorder %v542, 0.0
        %vm545 = vcmp.gt.f32.partialorder %v543, 0.0
        %v546 = vmul.f32 %v542, 0.2
        %v547 = vmul.f32 %v543, 0.2
        %v548 = vsel %vm544, %v542, %v546
        %v549 = vsel %vm545, %v543, %v547
        %vm550 = vcmp.gt.f32.partialorder %v405, 0.0
        %vm551 = vcmp.gt.f32.partialorder %v406, 0.0
        %v552 = vsel %vm550, %v548, -9e+15
        %v553 = vsel %vm551, %v549, -9e+15
        %vm554 = vcmask 130048
        %v555 = vsel %vm554, %v552, -inf
        %556 = vmax.xlane.f32.xlu0 %v555
        %v557 = vpop.xlane.xlu0 %556
        %v558 = vsel %vm554, %v553, -inf
        %559 = vmax.xlane.f32.xlu0 %v558
        %v560 = vpop.xlane.xlu0 %559
        %v561 = vsub.f32 %v552, %v557
        %v562 = vsub.f32 %v553, %v560
        %v563 = vmul.f32 %v561, 1.442695
        %v564 = vpow.pop %v563
        %v565 = vmul.f32 %v562, 1.442695
        %v566 = vpow.pop %v565
        %v567 = vsel %vm554, %v564, 0.0
        %568 = vadd.xlane.f32.xlu0 %v567
        %v569 = vpop.xlane.xlu0 %568
        %v570 = vsel %vm554, %v566, 0.0
        %571 = vadd.xlane.f32.xlu0 %v570
        %v572 = vpop.xlane.xlu0 %571
        %v573 = vrcp.pop %v569
        %v574 = vrcp.pop %v572
        %v575 = vmul.f32 %v564, %v573
        %v576 = vmul.f32 %v566, %v574
        %v578 = vsel %vm554, %v575, 0
        %v581 = vsel %vm554, %v576, 0
        %583 = vmatprep.subr.mxu0 0.0
        %584 = vmatpush1.msra.mxu0 %v481
        %585 = vmatprep.subr.mxu0 0.0
        %586 = vmatpush1.msra.mxu0 %v486
        %587 = vmatprep.subr.mxu0 0.0
        %588 = vmatpush1.msra.mxu0 0.0
        %589 = vmatprep.subr.mxu0 0.0
        %590 = vmatpush1.msra.mxu0 0.0
        %591 = vmatprep.subr.mxu0 0.0
        %592 = vmatpush1.msra.mxu0 0.0
        %593 = vmatprep.subr.mxu0 0.0
        %594 = vmatpush1.msra.mxu0 0.0
        %595 = vmatprep.subr.mxu0 0.0
        %596 = vmatpush1.msra.mxu0 0.0
        %597 = vmatprep.subr.mxu0 0.0
        %598 = vmatpush1.msra.mxu0 0.0
        %599 = vmatprep.subr.mxu0 0.0
        %600 = vmatpush1.msra.mxu0 0.0
        %601 = vmatprep.subr.mxu0 0.0
        %602 = vmatpush1.msra.mxu0 0.0
        %603 = vmatprep.subr.mxu0 0.0
        %604 = vmatpush1.msra.mxu0 0.0
        %605 = vmatprep.subr.mxu0 0.0
        %606 = vmatpush1.msra.mxu0 0.0
        %607 = vmatprep.subr.mxu0 0.0
        %608 = vmatpush1.msra.mxu0 0.0
        %609 = vmatprep.subr.mxu0 0.0
        %610 = vmatpush1.msra.mxu0 0.0
        %611 = vmatprep.subr.mxu0 0.0
        %612 = vmatpush1.msra.mxu0 0.0
        %613 = vmatprep.subr.mxu0 0.0
        %614 = vmatpush1.msra.mxu0 0.0
        %615 = vmatprep.subr.mxu0 0.0
        %616 = vmatpush1.msra.mxu0 0.0
        %617 = vmatprep.subr.mxu0 0.0
        %618 = vmatpush1.msra.mxu0 0.0
        %619 = vmatprep.subr.mxu0 0.0
        %620 = vmatpush1.msra.mxu0 0.0
        %621 = vmatprep.subr.mxu0 0.0
        %622 = vmatpush1.msra.mxu0 0.0
        %623 = vmatprep.subr.mxu0 0.0
        %624 = vmatpush1.msra.mxu0 0.0
        %625 = vmatprep.subr.mxu0 0.0
        %626 = vmatpush1.msra.mxu0 0.0
        %627 = vmatprep.subr.mxu0 0.0
        %628 = vmatpush1.msra.mxu0 0.0
        %629 = vmatprep.subr.mxu0 0.0
        %630 = vmatpush1.msra.mxu0 0.0
        %631 = vmatprep.subr.mxu0 0.0
        %632 = vmatpush1.msra.mxu0 0.0
        %633 = vmatprep.subr.mxu0 0.0
        %634 = vmatpush1.msra.mxu0 0.0
        %635 = vmatprep.subr.mxu0 0.0
        %636 = vmatpush1.msra.mxu0 0.0
        %637 = vmatprep.subr.mxu0 0.0
        %638 = vmatpush1.msra.mxu0 0.0
        %639 = vmatprep.subr.mxu0 0.0
        %640 = vmatpush1.msra.mxu0 0.0
        %641 = vmatprep.subr.mxu0 0.0
        %642 = vmatpush1.msra.mxu0 0.0
        %643 = vmatprep.subr.mxu0 0.0
        %644 = vmatpush1.msra.mxu0 0.0
        %645 = vmatprep.subr.mxu0 0.0
        %646 = vmatpush1.msra.mxu0 0.0
        %647 = vmatprep.mubr.f32.mxu0 0.0
        %648 = vmatmul.mubr.f32.gmra.mrb[0].mxu0 %v578
        %v649 = vpop.f32.mrb[0].mxu0
        %v650 = vadd.f32 0.0, %v649
        %v651 = vpop.f32.mrb[0].mxu0
        %652 = vmatprep.mubr.f32.mxu0 0.0
        %653 = vmatmul.mubr.f32.gmra.mrb[0].mxu0 %v581
        %v654 = vpop.f32.mrb[0].mxu0
        %v655 = vadd.f32 0.0, %v654
        %v656 = vpop.f32.mrb[0].mxu0
        %657 = vdwg.mxu0
        %vm658 = vcmp.gt.f32.partialorder %v650, 0.0
        %vm659 = vcmp.gt.f32.partialorder %v655, 0.0
        %v660 = vmin.f32 %v650, 0.0
        %v661 = vmin.f32 %v655, 0.0
        %v662 = vmul.f32 %v660, 1.442695
        %v663 = vpow.pop %v662
        %v664 = vmul.f32 %v661, 1.442695
        %v665 = vpow.pop %v664
        %v666 = vsub.f32 %v663, 1.0
        %v667 = vsub.f32 %v665, 1.0
        %v668 = vsel %vm658, %v650, %v666
        %v669 = vsel %vm659, %v655, %v667
        %v670 = vlaneseq
        %v671 = vshrl.u32 %v670, 7
        %v672 = vsub.s32 1, %v671
        %v673 = vrot.slane %v403, %v672
        %675 = vrot.lane.b32.xlu0 %v673, 8
        %v676 = vpop.permute.xlu0 %675
        %v678 = vmul.f32 %v481, %v676
        %v679 = vmul.f32 %v486, %v676
        %682 = vrot.lane.b32.xlu0 %v678, 120
        %v683 = vpop.permute.xlu0 %682
        %684 = vrot.lane.b32.xlu0 %v679, 120
        %v685 = vpop.permute.xlu0 %684
        %v688 = vsel %vm407, %v683, 0.0
        %689 = vadd.xlane.f32.xlu0 %v688
        %v690 = vpop.xlane.xlu0 %689
        %v691 = vsel %vm407, %v685, 0.0
        %692 = vadd.xlane.f32.xlu0 %v691
        %v693 = vpop.xlane.xlu0 %692
        %v694 = vlaneseq
        %v695 = vshrl.u32 %v694, 7
        %v696 = vsub.s32 1, %v695
        %v697 = vrot.slane %v404, %v696
        %699 = vrot.lane.b32.xlu0 %v697, 8
        %v700 = vpop.permute.xlu0 %699
        %v702 = vmul.f32 %v481, %v700
        %v703 = vmul.f32 %v486, %v700
        %706 = vrot.lane.b32.xlu0 %v702, 120
        %v707 = vpop.permute.xlu0 %706
        %708 = vrot.lane.b32.xlu0 %v703, 120
        %v709 = vpop.permute.xlu0 %708
        %v712 = vsel %vm407, %v707, 0.0
        %713 = vadd.xlane.f32.xlu0 %v712
        %v714 = vpop.xlane.xlu0 %713
        %v715 = vsel %vm407, %v709, 0.0
        %716 = vadd.xlane.f32.xlu0 %v715
        %v717 = vpop.xlane.xlu0 %716
        %v720 = vlaneseq
        %v721 = vshrl.u32 %v720, 7
        %v722 = vsub.s32 %v516, %v721
        %v723 = vrot.slane %v714, %v722
        %v724 = vlaneseq
        %v725 = vshrl.u32 %v724, 7
        %v726 = vsub.s32 %v521, %v725
        %v727 = vrot.slane %v717, %v726
        %v728 = vsel %vm526, %v727, %v723
        %v729 = vsel %vm529, %v728, %v728
        %v730 = vsel %vm531, %v728, %v729
        %v731 = vsel %vm533, %v728, %v730
        %v732 = vsel %vm535, %v728, %v731
        %v733 = vsel %vm537, %v728, %v732
        %v734 = vsel %vm539, %v728, %v733
        %v736 = vadd.f32 %v690, %v734
        %v737 = vadd.f32 %v693, %v734
        %vm738 = vcmp.gt.f32.partialorder %v736, 0.0
        %vm739 = vcmp.gt.f32.partialorder %v737, 0.0
        %v740 = vmul.f32 %v736, 0.2
        %v741 = vmul.f32 %v737, 0.2
        %v742 = vsel %vm738, %v736, %v740
        %v743 = vsel %vm739, %v737, %v741
        %v744 = vsel %vm550, %v742, -9e+15
        %v745 = vsel %vm551, %v743, -9e+15
        %v746 = vsel %vm554, %v744, -inf
        %747 = vmax.xlane.f32.xlu0 %v746
        %v748 = vpop.xlane.xlu0 %747
        %v749 = vsel %vm554, %v745, -inf
        %750 = vmax.xlane.f32.xlu0 %v749
        %v751 = vpop.xlane.xlu0 %750
        %v752 = vsub.f32 %v744, %v748
        %v753 = vsub.f32 %v745, %v751
        %v754 = vmul.f32 %v752, 1.442695
        %v755 = vpow.pop %v754
        %v756 = vmul.f32 %v753, 1.442695
        %v757 = vpow.pop %v756
        %v758 = vsel %vm554, %v755, 0.0
        %759 = vadd.xlane.f32.xlu0 %v758
        %v760 = vpop.xlane.xlu0 %759
        %v761 = vsel %vm554, %v757, 0.0
        %762 = vadd.xlane.f32.xlu0 %v761
        %v763 = vpop.xlane.xlu0 %762
        %v764 = vrcp.pop %v760
        %v765 = vrcp.pop %v763
        %v766 = vmul.f32 %v755, %v764
        %v767 = vmul.f32 %v757, %v765
        %770 = vrot.lane.b32.xlu0 %v481, 120
        %v771 = vpop.permute.xlu0 %770
        %772 = vrot.lane.b32.xlu0 %v486, 120
        %v773 = vpop.permute.xlu0 %772
        %v777 = vsel %vm554, %v766, 0
        %v780 = vsel %vm554, %v767, 0
        %782 = vmatprep.subr.mxu0 0.0
        %783 = vmatpush1.msra.mxu0 %v771
        %784 = vmatprep.subr.mxu0 0.0
        %785 = vmatpush1.msra.mxu0 %v773
        %786 = vmatprep.subr.mxu0 0.0
        %787 = vmatpush1.msra.mxu0 0.0
        %788 = vmatprep.subr.mxu0 0.0
        %789 = vmatpush1.msra.mxu0 0.0
        %790 = vmatprep.subr.mxu0 0.0
        %791 = vmatpush1.msra.mxu0 0.0
        %792 = vmatprep.subr.mxu0 0.0
        %793 = vmatpush1.msra.mxu0 0.0
        %794 = vmatprep.subr.mxu0 0.0
        %795 = vmatpush1.msra.mxu0 0.0
        %796 = vmatprep.subr.mxu0 0.0
        %797 = vmatpush1.msra.mxu0 0.0
        %798 = vmatprep.subr.mxu0 0.0
        %799 = vmatpush1.msra.mxu0 0.0
        %800 = vmatprep.subr.mxu0 0.0
        %801 = vmatpush1.msra.mxu0 0.0
        %802 = vmatprep.subr.mxu0 0.0
        %803 = vmatpush1.msra.mxu0 0.0
        %804 = vmatprep.subr.mxu0 0.0
        %805 = vmatpush1.msra.mxu0 0.0
        %806 = vmatprep.subr.mxu0 0.0
        %807 = vmatpush1.msra.mxu0 0.0
        %808 = vmatprep.subr.mxu0 0.0
        %809 = vmatpush1.msra.mxu0 0.0
        %810 = vmatprep.subr.mxu0 0.0
        %811 = vmatpush1.msra.mxu0 0.0
        %812 = vmatprep.subr.mxu0 0.0
        %813 = vmatpush1.msra.mxu0 0.0
        %814 = vmatprep.subr.mxu0 0.0
        %815 = vmatpush1.msra.mxu0 0.0
        %816 = vmatprep.subr.mxu0 0.0
        %817 = vmatpush1.msra.mxu0 0.0
        %818 = vmatprep.subr.mxu0 0.0
        %819 = vmatpush1.msra.mxu0 0.0
        %820 = vmatprep.subr.mxu0 0.0
        %821 = vmatpush1.msra.mxu0 0.0
        %822 = vmatprep.subr.mxu0 0.0
        %823 = vmatpush1.msra.mxu0 0.0
        %824 = vmatprep.subr.mxu0 0.0
        %825 = vmatpush1.msra.mxu0 0.0
        %826 = vmatprep.subr.mxu0 0.0
        %827 = vmatpush1.msra.mxu0 0.0
        %828 = vmatprep.subr.mxu0 0.0
        %829 = vmatpush1.msra.mxu0 0.0
        %830 = vmatprep.subr.mxu0 0.0
        %831 = vmatpush1.msra.mxu0 0.0
        %832 = vmatprep.subr.mxu0 0.0
        %833 = vmatpush1.msra.mxu0 0.0
        %834 = vmatprep.subr.mxu0 0.0
        %835 = vmatpush1.msra.mxu0 0.0
        %836 = vmatprep.subr.mxu0 0.0
        %837 = vmatpush1.msra.mxu0 0.0
        %838 = vmatprep.subr.mxu0 0.0
        %839 = vmatpush1.msra.mxu0 0.0
        %840 = vmatprep.subr.mxu0 0.0
        %841 = vmatpush1.msra.mxu0 0.0
        %842 = vmatprep.subr.mxu0 0.0
        %843 = vmatpush1.msra.mxu0 0.0
        %844 = vmatprep.subr.mxu0 0.0
        %845 = vmatpush1.msra.mxu0 0.0
        %846 = vmatprep.mubr.f32.mxu0 0.0
        %847 = vmatmul.mubr.f32.gmra.mrb[0].mxu0 %v777
        %v848 = vpop.f32.mrb[0].mxu0
        %v849 = vadd.f32 0.0, %v848
        %v850 = vpop.f32.mrb[0].mxu0
        %851 = vmatprep.mubr.f32.mxu0 0.0
        %852 = vmatmul.mubr.f32.gmra.mrb[0].mxu0 %v780
        %v853 = vpop.f32.mrb[0].mxu0
        %v854 = vadd.f32 0.0, %v853
        %v855 = vpop.f32.mrb[0].mxu0
        %856 = vdwg.mxu0
        %vm857 = vcmp.gt.f32.partialorder %v849, 0.0
        %vm858 = vcmp.gt.f32.partialorder %v854, 0.0
        %v859 = vmin.f32 %v849, 0.0
        %v860 = vmin.f32 %v854, 0.0
        %v861 = vmul.f32 %v859, 1.442695
        %v862 = vpow.pop %v861
        %v863 = vmul.f32 %v860, 1.442695
        %v864 = vpow.pop %v863
        %v865 = vsub.f32 %v862, 1.0
        %v866 = vsub.f32 %v864, 1.0
        %v867 = vsel %vm857, %v849, %v865
        %v868 = vsel %vm858, %v854, %v866
        %871 = vrot.lane.b32.xlu0 %v867, 8
        %v872 = vpop.permute.xlu0 %871
        %873 = vrot.lane.b32.xlu0 %v868, 8
        %v874 = vpop.permute.xlu0 %873
        %v877 = vsel %vm407, %v668, %v872
        %v878 = vsel %vm407, %v669, %v874
        %s879 = smul.u32 %s26, 16
        %s880 = scalar_lea.vmem [#allocation2], %s879
        %881 = vst.msk [vmem:[%s880] sm:$0xff] %vm554, %v877
        %882 = vst.msk [vmem:[%s880 + $0x8] sm:$0xff] %vm554, %v878
        %p883 = scmp.eq.s32.totalorder %s26, 2
        // Predicated region
        $region65: #{tpu_custom_call.1} parent=51 // pred_check
          %p884 = pneg %p883
        $region66: #{tpu_custom_call.1} parent=51 // pred_check_branch
          %886 = sbr.rel (%p884) target = $region68
        $region67: #{tpu_custom_call.1} parent=51 // pred_region
          %v887 = vld [vmem:[#allocation2] sm:$0xff]
          %v888 = vld [vmem:[#allocation2 + $0x8] sm:$0xff]
          %v889 = vld [vmem:[#allocation2 + $0x10] sm:$0xff]
          %v890 = vld [vmem:[#allocation2 + $0x18] sm:$0xff]
          %v891 = vld [vmem:[#allocation2 + $0x20] sm:$0xff]
          %v892 = vld [vmem:[#allocation2 + $0x28] sm:$0xff]
          %v893 = vld [vmem:[%s5] sm:$0xff]
          %v894 = vld [vmem:[%s5 + $0x8] sm:$0xff]
          %v895 = vld [vmem:[%s6] sm:$0x1]
          %v897 = vlaneseq
          %v898 = vshrl.u32 %v897, 7
          %v899 = vsub.s32 0, %v898
          %v900 = vrot.slane %v895, %v899
          %v903 = vsel %vm554, %v887, 0
          %v906 = vsel %vm554, %v888, 0
          %v909 = vsel %vm554, %v889, 0
          %v912 = vsel %vm554, %v890, 0
          %v915 = vsel %vm554, %v891, 0
          %v918 = vsel %vm554, %v892, 0
          %920 = vmatprep.subr.mxu0 0.0
          %921 = vmatpush1.msra.mxu0 %v893
          %922 = vmatprep.subr.mxu0 0.0
          %923 = vmatpush1.msra.mxu0 %v894
          %924 = vmatprep.subr.mxu0 0.0
          %925 = vmatpush1.msra.mxu0 0.0
          %926 = vmatprep.subr.mxu0 0.0
          %927 = vmatpush1.msra.mxu0 0.0
          %928 = vmatprep.subr.mxu0 0.0
          %929 = vmatpush1.msra.mxu0 0.0
          %930 = vmatprep.subr.mxu0 0.0
          %931 = vmatpush1.msra.mxu0 0.0
          %932 = vmatprep.subr.mxu0 0.0
          %933 = vmatpush1.msra.mxu0 0.0
          %934 = vmatprep.subr.mxu0 0.0
          %935 = vmatpush1.msra.mxu0 0.0
          %936 = vmatprep.subr.mxu0 0.0
          %937 = vmatpush1.msra.mxu0 0.0
          %938 = vmatprep.subr.mxu0 0.0
          %939 = vmatpush1.msra.mxu0 0.0
          %940 = vmatprep.subr.mxu0 0.0
          %941 = vmatpush1.msra.mxu0 0.0
          %942 = vmatprep.subr.mxu0 0.0
          %943 = vmatpush1.msra.mxu0 0.0
          %944 = vmatprep.subr.mxu0 0.0
          %945 = vmatpush1.msra.mxu0 0.0
          %946 = vmatprep.subr.mxu0 0.0
          %947 = vmatpush1.msra.mxu0 0.0
          %948 = vmatprep.subr.mxu0 0.0
          %949 = vmatpush1.msra.mxu0 0.0
          %950 = vmatprep.subr.mxu0 0.0
          %951 = vmatpush1.msra.mxu0 0.0
          %952 = vmatprep.subr.mxu0 0.0
          %953 = vmatpush1.msra.mxu0 0.0
          %954 = vmatprep.subr.mxu0 0.0
          %955 = vmatpush1.msra.mxu0 0.0
          %956 = vmatprep.subr.mxu0 0.0
          %957 = vmatpush1.msra.mxu0 0.0
          %958 = vmatprep.subr.mxu0 0.0
          %959 = vmatpush1.msra.mxu0 0.0
          %960 = vmatprep.subr.mxu0 0.0
          %961 = vmatpush1.msra.mxu0 0.0
          %962 = vmatprep.subr.mxu0 0.0
          %963 = vmatpush1.msra.mxu0 0.0
          %964 = vmatprep.subr.mxu0 0.0
          %965 = vmatpush1.msra.mxu0 0.0
          %966 = vmatprep.subr.mxu0 0.0
          %967 = vmatpush1.msra.mxu0 0.0
          %968 = vmatprep.subr.mxu0 0.0
          %969 = vmatpush1.msra.mxu0 0.0
          %970 = vmatprep.subr.mxu0 0.0
          %971 = vmatpush1.msra.mxu0 0.0
          %972 = vmatprep.subr.mxu0 0.0
          %973 = vmatpush1.msra.mxu0 0.0
          %974 = vmatprep.subr.mxu0 0.0
          %975 = vmatpush1.msra.mxu0 0.0
          %976 = vmatprep.subr.mxu0 0.0
          %977 = vmatpush1.msra.mxu0 0.0
          %978 = vmatprep.subr.mxu0 0.0
          %979 = vmatpush1.msra.mxu0 0.0
          %980 = vmatprep.subr.mxu0 0.0
          %981 = vmatpush1.msra.mxu0 0.0
          %982 = vmatprep.subr.mxu0 0.0
          %983 = vmatpush1.msra.mxu0 0.0
          %984 = vmatprep.mubr.f32.mxu0 0.0
          %985 = vmatmul.mubr.f32.gmra.mrb[0].mxu0 %v903
          %v986 = vpop.f32.mrb[0].mxu0
          %v987 = vadd.f32 %v900, %v986
          %v988 = vpop.f32.mrb[0].mxu0
          %989 = vmatprep.mubr.f32.mxu0 0.0
          %990 = vmatmul.mubr.f32.gmra.mrb[0].mxu0 %v906
          %v991 = vpop.f32.mrb[0].mxu0
          %v992 = vadd.f32 %v900, %v991
          %v993 = vpop.f32.mrb[0].mxu0
          %994 = vmatprep.mubr.f32.mxu0 0.0
          %995 = vmatmul.mubr.f32.gmra.mrb[0].mxu0 %v909
          %v996 = vpop.f32.mrb[0].mxu0
          %v997 = vadd.f32 %v900, %v996
          %v998 = vpop.f32.mrb[0].mxu0
          %999 = vmatprep.mubr.f32.mxu0 0.0
          %1000 = vmatmul.mubr.f32.gmra.mrb[0].mxu0 %v912
          %v1001 = vpop.f32.mrb[0].mxu0
          %v1002 = vadd.f32 %v900, %v1001
          %v1003 = vpop.f32.mrb[0].mxu0
          %1004 = vmatprep.mubr.f32.mxu0 0.0
          %1005 = vmatmul.mubr.f32.gmra.mrb[0].mxu0 %v915
          %v1006 = vpop.f32.mrb[0].mxu0
          %v1007 = vadd.f32 %v900, %v1006
          %v1008 = vpop.f32.mrb[0].mxu0
          %1009 = vmatprep.mubr.f32.mxu0 0.0
          %1010 = vmatmul.mubr.f32.gmra.mrb[0].mxu0 %v918
          %v1011 = vpop.f32.mrb[0].mxu0
          %v1012 = vadd.f32 %v900, %v1011
          %v1013 = vpop.f32.mrb[0].mxu0
          %1014 = vdwg.mxu0
          %v1015 = vtanh.pop %v987
          %v1016 = vtanh.pop %v992
          %v1017 = vtanh.pop %v997
          %v1018 = vtanh.pop %v1002
          %v1019 = vtanh.pop %v1007
          %v1020 = vtanh.pop %v1012
          %v1021 = vld [vmem:[%s7] sm:$0x1]
          %v1023 = vlaneseq
          %v1024 = vshrl.u32 %v1023, 7
          %v1025 = vsub.s32 0, %v1024
          %v1026 = vrot.slane %v1021, %v1025
          %v1028 = vmul.f32 %v1015, %v1026
          %v1029 = vmul.f32 %v1016, %v1026
          %v1030 = vmul.f32 %v1017, %v1026
          %v1031 = vmul.f32 %v1018, %v1026
          %v1032 = vmul.f32 %v1019, %v1026
          %v1033 = vmul.f32 %v1020, %v1026
          %1034 = vadd.xlane.f32.xlu0 %v1028
          %v1035 = vpop.xlane.xlu0 %1034
          %1036 = vadd.xlane.f32.xlu0 %v1029
          %v1037 = vpop.xlane.xlu0 %1036
          %1038 = vadd.xlane.f32.xlu0 %v1030
          %v1039 = vpop.xlane.xlu0 %1038
          %1040 = vadd.xlane.f32.xlu0 %v1031
          %v1041 = vpop.xlane.xlu0 %1040
          %1042 = vadd.xlane.f32.xlu0 %v1032
          %v1043 = vpop.xlane.xlu0 %1042
          %1044 = vadd.xlane.f32.xlu0 %v1033
          %v1045 = vpop.xlane.xlu0 %1044
          %v1052 = vlaneseq
          %v1053 = vshrl.u32 %v1052, 7
          %v1054 = vsub.s32 %v516, %v1053
          %v1055 = vrot.slane %v1035, %v1054
          %v1056 = vlaneseq
          %v1057 = vshrl.u32 %v1056, 7
          %v1058 = vsub.s32 %v521, %v1057
          %v1059 = vrot.slane %v1037, %v1058
          %v1060 = vsel %vm526, %v1059, %v1055
          %v1061 = vlaneseq
          %v1062 = vshrl.u32 %v1061, 7
          %v1063 = vsub.s32 %v516, %v1062
          %v1064 = vrot.slane %v1039, %v1063
          %v1065 = vlaneseq
          %v1066 = vshrl.u32 %v1065, 7
          %v1067 = vsub.s32 %v521, %v1066
          %v1068 = vrot.slane %v1041, %v1067
          %v1069 = vsel %vm526, %v1068, %v1064
          %v1070 = vlaneseq
          %v1071 = vshrl.u32 %v1070, 7
          %v1072 = vsub.s32 %v516, %v1071
          %v1073 = vrot.slane %v1043, %v1072
          %v1074 = vlaneseq
          %v1075 = vshrl.u32 %v1074, 7
          %v1076 = vsub.s32 %v521, %v1075
          %v1077 = vrot.slane %v1045, %v1076
          %v1078 = vsel %vm526, %v1077, %v1073
          %v1079 = vsel %vm528, %v1069, %v1060
          %v1080 = vsel %vm529, %v1078, %v1079
          %vm1082 = vcmask 124928
          %v1083 = vsel %vm1082, %v1080, 0.0
          %1084 = vadd.xlane.f32.xlu0 %v1083
          %v1085 = vpop.xlane.xlu0 %1084
          %v1086 = vrcp.pop 16.0
          %v1087 = vmul.f32 %v1085, %v1086
          %vm1088 = vcmask 1042432
          %v1089 = vsel %vm1088, %v1087, -inf
          %v1090 = vrot.slane %v1089, 4
          %v1091 = vmax.f32 %v1089, %v1090
          %v1092 = vrot.slane %v1091, 2
          %v1093 = vmax.f32 %v1091, %v1092
          %v1094 = vrot.slane %v1093, 1
          %v1095 = vmax.f32 %v1093, %v1094
          %v1096 = vsub.f32 %v1087, %v1095
          %v1097 = vmul.f32 %v1096, 1.442695
          %v1098 = vpow.pop %v1097
          %v1099 = vsel %vm1088, %v1098, 0.0
          %v1100 = vrot.slane %v1099, 4
          %v1101 = vadd.f32 %v1099, %v1100
          %v1102 = vrot.slane %v1101, 2
          %v1103 = vadd.f32 %v1101, %v1102
          %v1104 = vrot.slane %v1103, 1
          %v1105 = vadd.f32 %v1103, %v1104
          %v1106 = vrcp.pop %v1105
          %v1107 = vmul.f32 %v1098, %v1106
          %v1109 = vlaneseq
          %v1110 = vshrl.u32 %v1109, 7
          %v1111 = vsub.s32 0, %v1110
          %v1112 = vrot.slane %v1107, %v1111
          %v1113 = vlaneseq
          %v1114 = vshrl.u32 %v1113, 7
          %v1115 = vsub.s32 1, %v1114
          %v1116 = vrot.slane %v1107, %v1115
          %v1117 = vlaneseq
          %v1118 = vshrl.u32 %v1117, 7
          %v1119 = vsub.s32 2, %v1118
          %v1120 = vrot.slane %v1107, %v1119
          %v1124 = vmul.f32 %v887, %v1112
          %v1125 = vmul.f32 %v888, %v1112
          %v1126 = vmul.f32 %v889, %v1116
          %v1127 = vmul.f32 %v890, %v1116
          %v1128 = vmul.f32 %v891, %v1120
          %v1129 = vmul.f32 %v892, %v1120
          %v1130 = vsel %vm554, %v1124, 0.0
          %v1131 = vsel %vm554, %v1126, 0.0
          %v1132 = vadd.f32 %v1130, %v1131
          %v1133 = vsel %vm554, %v1128, 0.0
          %v1134 = vadd.f32 %v1132, %v1133
          %v1135 = vsel %vm554, %v1125, 0.0
          %v1136 = vsel %vm554, %v1127, 0.0
          %v1137 = vadd.f32 %v1135, %v1136
          %v1138 = vsel %vm554, %v1129, 0.0
          %v1139 = vadd.f32 %v1137, %v1138
          %1140 = vst.msk [vmem:[#allocation9] sm:$0xff] %vm554, %v1134
          %1141 = vst.msk [vmem:[#allocation9 + $0x8] sm:$0xff] %vm554, %v1139
        $region68: #{tpu_custom_call.1} parent=51 // pred_fallthru
          _
        // Predicated region
        $region69: #{tpu_custom_call.1} parent=51 // pred_check
          %p1142 = pneg %p227
        $region70: #{tpu_custom_call.1} parent=51 // pred_check_branch
          %1144 = sbr.rel (%p1142) target = $region72
        $region71: #{tpu_custom_call.1} parent=51 // pred_region
          %s1146 = ssub.s32 256, 256
          %1147 = vsyncadd [#allocation5], %s1146
          %s1148 = sshll.u32 [#allocation9], 4
          %s1149 = int_to_ptr.vmem [resolvable:$true] %s1148
          %1154 = dma.vmem_to_hbm [thread:$0]  %s1149, 256, %s8, [#allocation5], 128, 128, 8
        $region72: #{tpu_custom_call.1} parent=51 // pred_fallthru
          _
        // Predicated region
        $region73: #{tpu_custom_call.1} parent=51 // pred_check
          %p1155 = pneg %p227
        $region74: #{tpu_custom_call.1} parent=51 // pred_check_branch
          %1157 = sbr.rel (%p1155) target = $region76
        $region75: #{tpu_custom_call.1} parent=51 // pred_region
          %1158 = dma.done [#allocation5], 256
        $region76: #{tpu_custom_call.1} parent=51 // pred_fallthru
          _
      $region52: #{tpu_custom_call.1} parent=5 // pred_fallthru
        _
      %p1159 = scmp.le.s32.totalorder 2, %s21
      // Predicated region
      $region77: #{tpu_custom_call.1} parent=5 // pred_check
        %p1160 = pneg %p1159
      $region78: #{tpu_custom_call.1} parent=5 // pred_check_branch
        %1162 = sbr.rel (%p1160) target = $region80
      $region79: #{tpu_custom_call.1} parent=5 // pred_region
        %s1163 = ssub.s32 %s21, 2
      $region80: #{tpu_custom_call.1} parent=5 // pred_fallthru
        _
    $region6: #{tpu_custom_call.1} parent=1 // loop_footer
      %s25 = sadd.s32 1, %s21
    $region7: #{tpu_custom_call.1} parent=1 // loop_footer_branch
      %20 = sbr.rel target = $region3
    $region8: #{tpu_custom_call.1} parent=1 // loop_exit
      _
    %1164 = vsyncpa [#allocation4], 1
    %s1165 = scalar_lea.sflag [#allocation4], 1
    %1166 = vsyncpa %s1165, 1
    %1167 = vsyncpa [#allocation7], 1
    %s1168 = scalar_lea.sflag [#allocation7], 1
    %1169 = vsyncpa %s1168, 1
    %1170 = vsyncpa [#allocation5], 1
    %s1171 = scalar_lea.sflag [#allocation5], 1
    %1172 = vsyncpa %s1171, 1

</llo_original>
